<compile_context>
chip_gen: v7x
topology: tpu7x:2x2x1
jax: 0.10.0
libtpu: 0.0.40
codegen_flags: <defaults>
</compile_context>

<pallas_src>
import functools

import jax
import jax.numpy as jnp
from jax.experimental import pallas as pl
from jax.experimental.pallas import tpu as pltpu


def _channel_attention_kernel(x_ref, w1_ref, w2_ref, o_ref, sum_acc, max_acc,
                              *, hw, thw, needs_mask):
    # x_ref:  (1, C, THW) spatial tile of the flattened input
    # w1_ref: (hidden, C)  first 1x1 conv weight   (hidden = C // 16)
    # w2_ref: (C, hidden)  second 1x1 conv weight
    # o_ref:  (1, C, 1)    sigmoid(fc(avg) + fc(max)) for this batch element
    # sum_acc / max_acc: (C, 128) f32 VMEM running accumulators
    t = pl.program_id(1)
    num_t = pl.num_programs(1)

    @pl.when(t == 0)
    def _init():
        sum_acc[...] = jnp.zeros_like(sum_acc)
        max_acc[...] = jnp.full_like(max_acc, -jnp.inf)

    n_chunks = thw // 128
    if needs_mask:
        lane_idx = jax.lax.broadcasted_iota(jnp.int32, (1, 128), 1)
        base = t * thw

    # VPU-only accumulation into (C, 128); the cross-lane (XLU) reduce happens
    # exactly once per batch element, in the finalize block below.
    for j in range(n_chunks):
        chunk = x_ref[0, :, j * 128:(j + 1) * 128].astype(jnp.float32)   # (C,128)
        if needs_mask:
            # Zero padding is neutral for the sum; only the max needs -inf.
            valid = (base + (j * 128) + lane_idx) < hw                    # (1,128)
            chunk_for_max = jnp.where(valid, chunk, -jnp.inf)
        else:
            chunk_for_max = chunk
        sum_acc[...] = sum_acc[...] + chunk
        max_acc[...] = jnp.maximum(max_acc[...], chunk_for_max)

    @pl.when(t == num_t - 1)
    def _finalize():
        # One XLU lane-reduce per pooling, once per batch element.
        avg = jnp.sum(sum_acc[...], axis=-1, keepdims=True) * (1.0 / hw)  # (C,1)
        mx = jnp.max(max_acc[...], axis=-1, keepdims=True)                # (C,1)
        pooled = jnp.concatenate([avg, mx], axis=-1)                      # (C,2)

        # Shared MLP applied to both pooled vectors at once (as columns),
        # so no transposes are needed in-kernel or in the wrapper.
        h = jnp.dot(w1_ref[...], pooled, preferred_element_type=jnp.float32)
        h = jnp.maximum(h, 0.0)                                           # (hidden,2)
        y = jnp.dot(w2_ref[...], h, preferred_element_type=jnp.float32)   # (C,2)

        # sigmoid(fc(avg) + fc(max))
        o_ref[0] = jax.nn.sigmoid(y[:, 0:1] + y[:, 1:2])                  # (C,1)


def channel_attention(x, w1, w2, *, max_tile_bytes=2 * 1024 * 1024):
    """x: (B, C, H, W); w1: (C//16, C); w2: (C, C//16)  ->  (B, C, 1, 1)."""
    B, C, H, W = x.shape
    hidden = w1.shape[0]
    assert w1.shape == (hidden, C) and w2.shape == (C, hidden)

    HW = H * W
    itemsize = jnp.dtype(x.dtype).itemsize

    # --- choose spatial tile (lanes) ---------------------------------------
    # Round HW up to a lane multiple, then pick the largest tile that keeps a
    # single buffer under `max_tile_bytes` (double-buffered stays comfortably
    # inside the default scoped VMEM limit on v5e/v6e/v7x), capped at 2048
    # lanes (measured sweet spot for tiled mem-bound reductions).
    hw_pad128 = ((HW + 127) // 128) * 128
    budget_lanes = max(128, (max_tile_bytes // (C * itemsize)) // 128 * 128)
    thw = min(hw_pad128, min(2048, budget_lanes))
    hw_pad = ((hw_pad128 + thw - 1) // thw) * thw
    num_t = hw_pad // thw
    needs_mask = hw_pad != HW

    x_flat = x.reshape(B, C, HW)
    if hw_pad != HW:
        x_flat = jnp.pad(x_flat, ((0, 0), (0, 0), (0, hw_pad - HW)))

    kernel = functools.partial(
        _channel_attention_kernel, hw=HW, thw=thw, needs_mask=needs_mask)

    out = pl.pallas_call(
        kernel,
        out_shape=jax.ShapeDtypeStruct((B, C, 1), jnp.float32),
        grid_spec=pltpu.PrefetchScalarGridSpec(
            num_scalar_prefetch=0,
            grid=(B, num_t),
            in_specs=[
                pl.BlockSpec((1, C, thw), lambda b, t: (b, 0, t)),
                pl.BlockSpec((hidden, C), lambda b, t: (0, 0)),
                pl.BlockSpec((C, hidden), lambda b, t: (0, 0)),
            ],
            out_specs=pl.BlockSpec((1, C, 1), lambda b, t: (b, 0, 0)),
            scratch_shapes=[
                pltpu.VMEM((C, 128), jnp.float32),  # running sum
                pltpu.VMEM((C, 128), jnp.float32),  # running max
            ],
        ),
        compiler_params=pltpu.CompilerParams(
            dimension_semantics=("parallel", "arbitrary"),
        ),
    )(x_flat, w1, w2)

    return out.reshape(B, C, 1, 1)


def _reference(x, w1, w2):
    # Pure-JAX reference matching the PyTorch forward exactly.
    avg = jnp.mean(x, axis=(2, 3))            # (B, C)
    mx = jnp.max(x, axis=(2, 3))              # (B, C)

    def fc(v):
        h = jnp.maximum(v @ w1.T, 0.0)        # (B, C//16)
        return h @ w2.T                       # (B, C)

    out = jax.nn.sigmoid(fc(avg) + fc(mx))
    return out[:, :, None, None]


if __name__ == "__main__":
    key = jax.random.PRNGKey(0)
    k_x, k_w1, k_w2 = jax.random.split(key, 3)

    B, C, H, W = 2, 64, 16, 16            # in_planes=64 -> hidden = 64 // 16 = 4
    hidden = C // 16

    x = jax.random.normal(k_x, (B, C, H, W), dtype=jnp.float32)
    # Deterministic kaiming-style init for the 1x1 conv weights (bias=False).
    w1 = jax.random.normal(k_w1, (hidden, C), dtype=jnp.float32) * (2.0 / C) ** 0.5
    w2 = jax.random.normal(k_w2, (C, hidden), dtype=jnp.float32) * (2.0 / hidden) ** 0.5

    out = channel_attention(x, w1, w2)
    out = jax.block_until_ready(out)

    ref = _reference(x, w1, w2)
    assert out.shape == (B, C, 1, 1)
    assert jnp.allclose(out, ref, atol=2e-5, rtol=2e-5), "mismatch vs reference"

    print("KERNEL_OK")
</pallas_src>

<mosaic_0001>
module attributes {stable_mosaic.version = 11 : i64} {
  func.func @_channel_attention_kernel(%arg0: i32, %arg1: i32, %arg2: memref<1x64x256xf32, #tpu.memory_space<vmem>>, %arg3: memref<4x64xf32, #tpu.memory_space<vmem>>, %arg4: memref<64x4xf32, #tpu.memory_space<vmem>>, %arg5: memref<1x64x1xf32, #tpu.memory_space<vmem>>, %arg6: memref<64x128xf32, #tpu.memory_space<vmem>>, %arg7: memref<64x128xf32, #tpu.memory_space<vmem>>) attributes {dimension_semantics = [#tpu.dimension_semantics<parallel>, #tpu.dimension_semantics<arbitrary>], iteration_bounds = array<i64: 2, 1>, scalar_prefetch = 0 : i64, scratch_operands = 2 : i64, tpu.core_type = #tpu.core_type<tc>, window_params = [{transform_indices = @transform_0, window_bounds = array<i64: 1, 64, 256>}, {pipeline_mode = #tpu.pipeline_mode<synchronous>, transform_indices = @transform_1, window_bounds = array<i64: 4, 64>}, {pipeline_mode = #tpu.pipeline_mode<synchronous>, transform_indices = @transform_2, window_bounds = array<i64: 64, 4>}, {transform_indices = @transform_3, window_bounds = array<i64: 1, 64, 1>}]} {
    %c0_i32 = arith.constant 0 : i32
    %0 = arith.cmpi eq, %arg1, %c0_i32 : i32
    %1 = arith.extui %0 : i1 to i32
    %c0_i32_0 = arith.constant 0 : i32
    %2 = arith.cmpi ne, %1, %c0_i32_0 : i32
    scf.if %2 {
      %cst = arith.constant 0.000000e+00 : f32
      %22 = vector.broadcast %cst : f32 to vector<64x128xf32>
      %c0_23 = arith.constant 0 : index
      %c0_24 = arith.constant 0 : index
      %23 = vector.load %arg6[%c0_23, %c0_24] : memref<64x128xf32, #tpu.memory_space<vmem>>, vector<64x128xf32>
      tpu.vector_store %arg6[%c0_23, %c0_24], %22 {strides = array<i32>} : memref<64x128xf32, #tpu.memory_space<vmem>>, vector<64x128xf32>,
      %cst_25 = arith.constant 0xFF800000 : f32
      %24 = vector.broadcast %cst_25 : f32 to vector<64x128xf32>
      %c0_26 = arith.constant 0 : index
      %c0_27 = arith.constant 0 : index
      %25 = vector.load %arg7[%c0_26, %c0_27] : memref<64x128xf32, #tpu.memory_space<vmem>>, vector<64x128xf32>
      tpu.vector_store %arg7[%c0_26, %c0_27], %24 {strides = array<i32>} : memref<64x128xf32, #tpu.memory_space<vmem>>, vector<64x128xf32>,
    } else {
    }
    %c0 = arith.constant 0 : index
    %c0_1 = arith.constant 0 : index
    %c0_2 = arith.constant 0 : index
    %3 = vector.load %arg2[%c0, %c0_1, %c0_2] : memref<1x64x256xf32, #tpu.memory_space<vmem>>, vector<1x64x128xf32>
    %4 = vector.shape_cast %3 : vector<1x64x128xf32> to vector<64x128xf32>
    %c0_3 = arith.constant 0 : index
    %c0_4 = arith.constant 0 : index
    %5 = vector.load %arg6[%c0_3, %c0_4] : memref<64x128xf32, #tpu.memory_space<vmem>>, vector<64x128xf32>
    %6 = arith.addf %5, %4 : vector<64x128xf32>
    %c0_5 = arith.constant 0 : index
    %c0_6 = arith.constant 0 : index
    %7 = vector.load %arg6[%c0_5, %c0_6] : memref<64x128xf32, #tpu.memory_space<vmem>>, vector<64x128xf32>
    tpu.vector_store %arg6[%c0_5, %c0_6], %6 {strides = array<i32>} : memref<64x128xf32, #tpu.memory_space<vmem>>, vector<64x128xf32>,
    %c0_7 = arith.constant 0 : index
    %c0_8 = arith.constant 0 : index
    %8 = vector.load %arg7[%c0_7, %c0_8] : memref<64x128xf32, #tpu.memory_space<vmem>>, vector<64x128xf32>
    %9 = arith.maximumf %8, %4 : vector<64x128xf32>
    %c0_9 = arith.constant 0 : index
    %c0_10 = arith.constant 0 : index
    %10 = vector.load %arg7[%c0_9, %c0_10] : memref<64x128xf32, #tpu.memory_space<vmem>>, vector<64x128xf32>
    tpu.vector_store %arg7[%c0_9, %c0_10], %9 {strides = array<i32>} : memref<64x128xf32, #tpu.memory_space<vmem>>, vector<64x128xf32>,
    %c0_11 = arith.constant 0 : index
    %c0_12 = arith.constant 0 : index
    %c128 = arith.constant 128 : index
    %11 = vector.load %arg2[%c0_11, %c0_12, %c128] : memref<1x64x256xf32, #tpu.memory_space<vmem>>, vector<1x64x128xf32>
    %12 = vector.shape_cast %11 : vector<1x64x128xf32> to vector<64x128xf32>
    %c0_13 = arith.constant 0 : index
    %c0_14 = arith.constant 0 : index
    %13 = vector.load %arg6[%c0_13, %c0_14] : memref<64x128xf32, #tpu.memory_space<vmem>>, vector<64x128xf32>
    %14 = arith.addf %13, %12 : vector<64x128xf32>
    %c0_15 = arith.constant 0 : index
    %c0_16 = arith.constant 0 : index
    %15 = vector.load %arg6[%c0_15, %c0_16] : memref<64x128xf32, #tpu.memory_space<vmem>>, vector<64x128xf32>
    tpu.vector_store %arg6[%c0_15, %c0_16], %14 {strides = array<i32>} : memref<64x128xf32, #tpu.memory_space<vmem>>, vector<64x128xf32>,
    %c0_17 = arith.constant 0 : index
    %c0_18 = arith.constant 0 : index
    %16 = vector.load %arg7[%c0_17, %c0_18] : memref<64x128xf32, #tpu.memory_space<vmem>>, vector<64x128xf32>
    %17 = arith.maximumf %16, %12 : vector<64x128xf32>
    %c0_19 = arith.constant 0 : index
    %c0_20 = arith.constant 0 : index
    %18 = vector.load %arg7[%c0_19, %c0_20] : memref<64x128xf32, #tpu.memory_space<vmem>>, vector<64x128xf32>
    tpu.vector_store %arg7[%c0_19, %c0_20], %17 {strides = array<i32>} : memref<64x128xf32, #tpu.memory_space<vmem>>, vector<64x128xf32>,
    %c0_i32_21 = arith.constant 0 : i32
    %19 = arith.cmpi eq, %arg1, %c0_i32_21 : i32
    %20 = arith.extui %19 : i1 to i32
    %c0_i32_22 = arith.constant 0 : i32
    %21 = arith.cmpi ne, %20, %c0_i32_22 : i32
    scf.if %21 {
      %c0_23 = arith.constant 0 : index
      %c0_24 = arith.constant 0 : index
      %22 = vector.load %arg6[%c0_23, %c0_24] : memref<64x128xf32, #tpu.memory_space<vmem>>, vector<64x128xf32>
      %cst = arith.constant dense<0.000000e+00> : vector<64xf32>
      %23 = vector.multi_reduction <add>, %22, %cst [1] : vector<64x128xf32> to vector<64xf32>
      %24 = vector.shape_cast %23 : vector<64xf32> to vector<64x1xf32>
      %cst_25 = arith.constant 3.906250e-03 : f32
      %25 = vector.broadcast %cst_25 : f32 to vector<64x1xf32>
      %26 = arith.mulf %24, %25 : vector<64x1xf32>
      %c0_26 = arith.constant 0 : index
      %c0_27 = arith.constant 0 : index
      %27 = vector.load %arg7[%c0_26, %c0_27] : memref<64x128xf32, #tpu.memory_space<vmem>>, vector<64x128xf32>
      %cst_28 = arith.constant dense<0xFF800000> : vector<64xf32>
      %28 = vector.multi_reduction <maximumf>, %27, %cst_28 [1] : vector<64x128xf32> to vector<64xf32>
      %29 = vector.shape_cast %28 : vector<64xf32> to vector<64x1xf32>
      %30 = tpu.concatenate %26, %29 in 1 : vector<64x1xf32>, vector<64x1xf32> -> vector<64x2xf32>
      %c0_29 = arith.constant 0 : index
      %c0_30 = arith.constant 0 : index
      %31 = vector.load %arg3[%c0_29, %c0_30] : memref<4x64xf32, #tpu.memory_space<vmem>>, vector<4x64xf32>
      %cst_31 = arith.constant dense<0.000000e+00> : vector<4x2xf32>
      %32 = tpu.matmul %31, %30, %cst_31 {dimension_numbers = #tpu.dot_dimension_numbers<[1], [0], [0], [1], [0, 0, 1, 1], [], []>} : vector<4x64xf32>, vector<64x2xf32>, vector<4x2xf32> -> vector<4x2xf32>
      %cst_32 = arith.constant 0.000000e+00 : f32
      %33 = vector.broadcast %cst_32 : f32 to vector<4x2xf32>
      %34 = arith.maximumf %32, %33 : vector<4x2xf32>
      %c0_33 = arith.constant 0 : index
      %c0_34 = arith.constant 0 : index
      %35 = vector.load %arg4[%c0_33, %c0_34] : memref<64x4xf32, #tpu.memory_space<vmem>>, vector<64x4xf32>
      %cst_35 = arith.constant dense<0.000000e+00> : vector<64x2xf32>
      %36 = tpu.matmul %35, %34, %cst_35 {dimension_numbers = #tpu.dot_dimension_numbers<[1], [0], [0], [1], [0, 0, 1, 1], [], []>} : vector<64x4xf32>, vector<4x2xf32>, vector<64x2xf32> -> vector<64x2xf32>
      %37 = vector.extract_strided_slice %36 {offsets = [0, 0], sizes = [64, 1], strides = [1, 1]} : vector<64x2xf32> to vector<64x1xf32>
      %38 = vector.extract_strided_slice %36 {offsets = [0, 1], sizes = [64, 1], strides = [1, 1]} : vector<64x2xf32> to vector<64x1xf32>
      %39 = arith.addf %37, %38 : vector<64x1xf32>
      %40 = arith.negf %39 : vector<64x1xf32>
      %41 = math.exp %40 : vector<64x1xf32>
      %cst_36 = arith.constant 1.000000e+00 : f32
      %42 = vector.broadcast %cst_36 : f32 to vector<64x1xf32>
      %43 = arith.addf %42, %41 : vector<64x1xf32>
      %44 = arith.divf %42, %43 : vector<64x1xf32>
      %c0_37 = arith.constant 0 : index
      %c0_38 = arith.constant 0 : index
      %c0_39 = arith.constant 0 : index
      %45 = vector.load %arg5[%c0_37, %c0_38, %c0_39] : memref<1x64x1xf32, #tpu.memory_space<vmem>>, vector<1x64x1xf32>
      %46 = vector.shape_cast %45 : vector<1x64x1xf32> to vector<64x1xf32>
      %47 = vector.shape_cast %44 : vector<64x1xf32> to vector<1x64x1xf32>
      tpu.vector_store %arg5[%c0_37, %c0_38, %c0_39], %47 {strides = array<i32>} : memref<1x64x1xf32, #tpu.memory_space<vmem>>, vector<1x64x1xf32>,
    } else {
    }
    return
  }
  func.func @transform_0(%arg0: i32, %arg1: i32) -> (i32, i32, i32) {
    %c0_i32 = arith.constant 0 : i32
    %c0_i32_0 = arith.constant 0 : i32
    return %arg0, %c0_i32, %arg1 : i32, i32, i32
  }
  func.func @transform_1(%arg0: i32, %arg1: i32) -> (i32, i32) {
    %c0_i32 = arith.constant 0 : i32
    %c0_i32_0 = arith.constant 0 : i32
    %c0_i32_1 = arith.constant 0 : i32
    return %c0_i32, %c0_i32_0 : i32, i32
  }
  func.func @transform_2(%arg0: i32, %arg1: i32) -> (i32, i32) {
    %c0_i32 = arith.constant 0 : i32
    %c0_i32_0 = arith.constant 0 : i32
    %c0_i32_1 = arith.constant 0 : i32
    return %c0_i32, %c0_i32_0 : i32, i32
  }
  func.func @transform_3(%arg0: i32, %arg1: i32) -> (i32, i32, i32) {
    %c0_i32 = arith.constant 0 : i32
    %c0_i32_0 = arith.constant 0 : i32
    %c0_i32_1 = arith.constant 0 : i32
    return %arg0, %c0_i32, %c0_i32_0 : i32, i32, i32
  }
}

</mosaic_0001>

<llo_original>
// kernel: tpu_custom_call.1
$region0: #{tpu_custom_call.1}
  #allocation0 [shape = 'u32[]', space=smem, size = 0x4, offset = 0x4, fixed_abs, tag = 'smem constant byte address 0x4 - core index']
  #allocation1 [shape = 'u32[144,128]{1,0:T(1,128)}', space=vmem, size = 0x12000, scoped, tag = 'internal scratch']
  #allocation2 [shape = 'f32[64,128]{1,0:T(8,128)}', space=vmem, size = 0x8000, scoped, tag = 'scratch operand']
  #allocation3 [shape = 'f32[64,128]{1,0:T(8,128)}', space=vmem, size = 0x8000, scoped, tag = 'scratch operand']
  %s0 = inlined_call_operand.hbm [shape: f32[2,64,256], index: 0, kind: input, shape index: {}]
  %s1 = inlined_call_operand.vmem [shape: f32[4,64], index: 1, kind: input, shape index: {}]
  %s2 = inlined_call_operand.vmem [shape: f32[64,4], index: 2, kind: input, shape index: {}]
  %s3 = inlined_call_operand.vmem [shape: f32[2,64,1], index: 3, kind: output, shape index: {}]
  %s4 = sld [smem:[#allocation0]]
  $region57: #{tpu_custom_call.1} parent=0
    _
  %s6 = ssub.s32 1, %s4
  %s7 = scalar_select 0, %s6, %s4
  $region1: #{tpu_custom_call.1} parent=0
    #allocation4 [shape = 'u8[131072]{0}', space=vmem, size = 0x20000, scoped, tag = 'input window, operand 0']
    #allocation5 [shape = 's32[2]{0}', space=sflag, size = 0x8, scoped, tag = 'scoped memory for tpu_custom_call.1']
    %8 = vsyncpa [#allocation5], 0
    %s9 = scalar_lea.sflag [#allocation5], 1
    %10 = vsyncpa %s9, 0
    loop: start=0, step=1, limit=4
    $region2: #{tpu_custom_call.1} parent=1 // loop_pre_header
      _
    $region3: #{tpu_custom_call.1} parent=1 // loop_header
      %s12 = sphi 0, %s16
      %p13 = scmp.ge.s32.totalorder %s12, 4
      %s19 = sphi 0, %s31
      %s20 = sphi 0, %s27
      %s21 = sphi 0, %s19
      %s22 = sphi 0, %s20
      %s23 = sphi 0, %s21
      %s24 = sphi 0, %s22
      %s36 = sphi 0, %s38
      %s39 = sphi 0, %s36
      %s40 = sphi 0, %s39
      %s56 = sphi 0, %s40
      %s60 = sphi 0, %s60
      %s62 = sphi 0, %s60
      %s63 = sphi 0, %s62
      %s77 = sphi 0, %s63
      %s81 = sphi 0, %s81
      %s83 = sphi 0, %s81
      %s84 = sphi 0, %s83
      %s98 = sphi 0, %s84
      %s104 = sphi 0, %s106
      %s107 = sphi 0, %s104
      %s108 = sphi 0, %s107
      %s124 = sphi 0, %s108
    $region4: #{tpu_custom_call.1} parent=1 // loop_header_branch
      %15 = sbr.rel (%p13) target = $region8
    $region5: #{tpu_custom_call.1} parent=1 // loop_body
      %s17 = ssub.s32 %s12, 1
      %s18 = ssub.s32 %s12, 2
      %s25 = sadd.s32 1, %s20
      %p26 = scmp.ge.s32.totalorder %s25, 1
      %s27 = scalar_select %p26, 0, %s25
      %s28 = sadd.s32 1, %s19
      %s29 = scalar_select %p26, %s28, %s19
      %p30 = scmp.ge.s32.totalorder %s29, 2
      %s31 = scalar_select %p30, 0, %s29
      %s32 = ssub.s32 %s19, %s31
      %s33 = ssub.s32 %s20, %s27
      %s34 = sor.u32 %s32, %s33
      %p35 = scmp.eq.s32.totalorder %s34, 0
      %s37 = sadd.s32 %s36, 1
      %s38 = scalar_select %p35, %s36, %s37
      %p41 = pneg %p35
      %p42 = scmp.eq.s32.totalorder %s12, 1
      %p43 = por %p41, %p42
      %p44 = scmp.ne.s32.totalorder %s36, %s39
      %p45 = scmp.eq.s32.totalorder %s12, 0
      %p46 = por %p44, %p45
      %p47 = scmp.ne.s32.totalorder %s36, %s39
      %p48 = scmp.eq.s32.totalorder %s17, 1
      %p49 = por %p47, %p48
      %p50 = scmp.ne.s32.totalorder %s39, %s40
      %p51 = scmp.eq.s32.totalorder %s17, 0
      %p52 = por %p50, %p51
      %p53 = scmp.ne.s32.totalorder %s39, %s40
      %p54 = scmp.eq.s32.totalorder %s18, 1
      %p55 = por %p53, %p54
      %p57 = scmp.ne.s32.totalorder %s40, %s56
      %p58 = scmp.eq.s32.totalorder %s18, 0
      %p59 = por %p57, %p58
      %s61 = sadd.s32 %s60, 1
      %p64 = scmp.eq.s32.totalorder %s12, 1
      %p65 = scmp.ne.s32.totalorder %s60, %s62
      %p66 = scmp.eq.s32.totalorder %s12, 0
      %p67 = por %p65, %p66
      %p68 = scmp.ne.s32.totalorder %s60, %s62
      %p69 = scmp.eq.s32.totalorder %s17, 1
      %p70 = por %p68, %p69
      %p71 = scmp.ne.s32.totalorder %s62, %s63
      %p72 = scmp.eq.s32.totalorder %s17, 0
      %p73 = por %p71, %p72
      %p74 = scmp.ne.s32.totalorder %s62, %s63
      %p75 = scmp.eq.s32.totalorder %s18, 1
      %p76 = por %p74, %p75
      %p78 = scmp.ne.s32.totalorder %s63, %s77
      %p79 = scmp.eq.s32.totalorder %s18, 0
      %p80 = por %p78, %p79
      %s82 = sadd.s32 %s81, 1
      %p85 = scmp.eq.s32.totalorder %s12, 1
      %p86 = scmp.ne.s32.totalorder %s81, %s83
      %p87 = scmp.eq.s32.totalorder %s12, 0
      %p88 = por %p86, %p87
      %p89 = scmp.ne.s32.totalorder %s81, %s83
      %p90 = scmp.eq.s32.totalorder %s17, 1
      %p91 = por %p89, %p90
      %p92 = scmp.ne.s32.totalorder %s83, %s84
      %p93 = scmp.eq.s32.totalorder %s17, 0
      %p94 = por %p92, %p93
      %p95 = scmp.ne.s32.totalorder %s83, %s84
      %p96 = scmp.eq.s32.totalorder %s18, 1
      %p97 = por %p95, %p96
      %p99 = scmp.ne.s32.totalorder %s84, %s98
      %p100 = scmp.eq.s32.totalorder %s18, 0
      %p101 = por %p99, %p100
      %s102 = ssub.s32 %s19, %s31
      %p103 = scmp.eq.s32.totalorder %s102, 0
      %s105 = sadd.s32 %s104, 1
      %s106 = scalar_select %p103, %s104, %s105
      %p109 = pneg %p103
      %p110 = scmp.eq.s32.totalorder %s12, 1
      %p111 = por %p109, %p110
      %p112 = scmp.ne.s32.totalorder %s104, %s107
      %p113 = scmp.eq.s32.totalorder %s12, 0
      %p114 = por %p112, %p113
      %p115 = scmp.ne.s32.totalorder %s104, %s107
      %p116 = scmp.eq.s32.totalorder %s17, 1
      %p117 = por %p115, %p116
      %p118 = scmp.ne.s32.totalorder %s107, %s108
      %p119 = scmp.eq.s32.totalorder %s17, 0
      %p120 = por %p118, %p119
      %p121 = scmp.ne.s32.totalorder %s107, %s108
      %p122 = scmp.eq.s32.totalorder %s18, 1
      %p123 = por %p121, %p122
      %p125 = scmp.ne.s32.totalorder %s108, %s124
      %p126 = scmp.eq.s32.totalorder %s18, 0
      %p127 = por %p125, %p126
      %p128 = scmp.le.s32.totalorder 1, %s12
      %p129 = scmp.lt.s32.totalorder %s12, 3
      %p130 = pnand %p128, %p129
      %p131 = pneg %p130
      // Predicated region
      $region9: #{tpu_custom_call.1} parent=5 // pred_check
        _
      $region10: #{tpu_custom_call.1} parent=5 // pred_check_branch
        %133 = sbr.rel (%p130) target = $region12
      $region11: #{tpu_custom_call.1} parent=5 // pred_region
        %s134 = ssub.s32 %s12, 1
        // Predicated region
        $region13: #{tpu_custom_call.1} parent=11 // pred_check
          %p135 = pneg %p73
        $region14: #{tpu_custom_call.1} parent=11 // pred_check_branch
          %137 = sbr.rel (%p135) target = $region16
        $region15: #{tpu_custom_call.1} parent=11 // pred_region
          _
        $region16: #{tpu_custom_call.1} parent=11 // pred_fallthru
          _
        // Predicated region
        $region17: #{tpu_custom_call.1} parent=11 // pred_check
          %p138 = pneg %p94
        $region18: #{tpu_custom_call.1} parent=11 // pred_check_branch
          %140 = sbr.rel (%p138) target = $region20
        $region19: #{tpu_custom_call.1} parent=11 // pred_region
          _
        $region20: #{tpu_custom_call.1} parent=11 // pred_fallthru
          _
      $region12: #{tpu_custom_call.1} parent=5 // pred_fallthru
        _
      %p141 = scmp.lt.s32.totalorder %s12, 2
      // Predicated region
      $region21: #{tpu_custom_call.1} parent=5 // pred_check
        %p142 = pneg %p141
      $region22: #{tpu_custom_call.1} parent=5 // pred_check_branch
        %144 = sbr.rel (%p142) target = $region24
      $region23: #{tpu_custom_call.1} parent=5 // pred_region
        // Predicated region
        $region25: #{tpu_custom_call.1} parent=23 // pred_check
          %p145 = pneg %p46
        $region26: #{tpu_custom_call.1} parent=23 // pred_check_branch
          %147 = sbr.rel (%p145) target = $region28
        $region27: #{tpu_custom_call.1} parent=23 // pred_region
          %s148 = sand.u32 %s36, 1
          %s149 = scalar_lea.sflag [#allocation5], %s148
          %s150 = sand.u32 %s36, 1
          %s151 = smul.addr %s150, 128
          %s152 = scalar_lea.vmem [#allocation4], %s151
          %s153 = smul.u32 2, %s20
          %s155 = ssub.s32 2048, 2048
          %156 = vsyncadd %s149, %s155
          %s157 = smul.addr %s19, 16
          %s158 = sadd.s32 %s153, %s157
          %s159 = smul.addr %s158, 128
          %s160 = scalar_lea.hbm %s0, %s159
          %s161 = sshll.u32 %s152, 4
          %s162 = int_to_ptr.vmem [resolvable:$true] %s161
          %167 = dma.hbm_to_vmem [thread:$0]  %s160, 2048, %s162, %s149, 256, 256, 16
        $region28: #{tpu_custom_call.1} parent=23 // pred_fallthru
          _
      $region24: #{tpu_custom_call.1} parent=5 // pred_fallthru
        _
      %p168 = scmp.le.s32.totalorder 1, %s12
      %p169 = scmp.lt.s32.totalorder %s12, 3
      %p170 = pnand %p168, %p169
      %p171 = pneg %p170
      // Predicated region
      $region29: #{tpu_custom_call.1} parent=5 // pred_check
        _
      $region30: #{tpu_custom_call.1} parent=5 // pred_check_branch
        %173 = sbr.rel (%p170) target = $region32
      $region31: #{tpu_custom_call.1} parent=5 // pred_region
        %s174 = ssub.s32 %s12, 1
        %s175 = sand.u32 %s39, 1
        %s176 = scalar_lea.sflag [#allocation5], %s175
        %s177 = sand.u32 %s39, 1
        %s178 = smul.addr %s177, 128
        %s179 = scalar_lea.vmem [#allocation4], %s178
        // Predicated region
        $region33: #{tpu_custom_call.1} parent=31 // pred_check
          %p180 = pneg %p52
        $region34: #{tpu_custom_call.1} parent=31 // pred_check_branch
          %182 = sbr.rel (%p180) target = $region36
        $region35: #{tpu_custom_call.1} parent=31 // pred_region
          %183 = dma.done %s176, 2048
        $region36: #{tpu_custom_call.1} parent=31 // pred_fallthru
          _
        %s184 = sand.u32 %s39, 1
        %s185 = scalar_lea.sflag [#allocation5], %s184
        %s186 = sand.u32 %s39, 1
        %s187 = smul.addr %s186, 128
        %s188 = scalar_lea.vmem [#allocation4], %s187
        %p189 = pneg %p52
        %p190 = pneg %p49
        %p191 = pneg %p73
        %p192 = pneg %p70
        %p193 = pneg %p94
        %p194 = pneg %p91
        %p195 = pneg %p120
        %p196 = pneg %p117
        %p197 = scmp.lt.s32.totalorder %s21, 1
        %s198 = scalar_select %p197, %s21, 1
        %s199 = smul.addr %s198, 8
        %s200 = smul.addr %s199, 8
        %s201 = scalar_lea.vmem %s3, %s200
        %s202 = smul.u32 2, %s22
        %p203 = scmp.lt.s32.totalorder %s21, 1
        %s204 = scalar_select %p203, %s21, 1
        %s205 = smul.addr %s204, 8
        %s206 = smul.addr %s205, 8
        %s207 = scalar_lea.vmem %s3, %s206
        %p208 = scmp.eq.s32.totalorder %s22, 0
        // Predicated region
        $region37: #{tpu_custom_call.1} parent=31 // pred_check
          %p209 = pneg %p208
        $region38: #{tpu_custom_call.1} parent=31 // pred_check_branch
          %211 = sbr.rel (%p209) target = $region40
        $region39: #{tpu_custom_call.1} parent=31 // pred_region
          %212 = vst [vmem:[#allocation2] sm:$0xff] 0.0
          %213 = vst [vmem:[#allocation2 + $0x8] sm:$0xff] 0.0
          %214 = vst [vmem:[#allocation2 + $0x10] sm:$0xff] 0.0
          %215 = vst [vmem:[#allocation2 + $0x18] sm:$0xff] 0.0
          %216 = vst [vmem:[#allocation2 + $0x20] sm:$0xff] 0.0
          %217 = vst [vmem:[#allocation2 + $0x28] sm:$0xff] 0.0
          %218 = vst [vmem:[#allocation2 + $0x30] sm:$0xff] 0.0
          %219 = vst [vmem:[#allocation2 + $0x38] sm:$0xff] 0.0
          %220 = vst [vmem:[#allocation3] sm:$0xff] -inf
          %221 = vst [vmem:[#allocation3 + $0x8] sm:$0xff] -inf
          %222 = vst [vmem:[#allocation3 + $0x10] sm:$0xff] -inf
          %223 = vst [vmem:[#allocation3 + $0x18] sm:$0xff] -inf
          %224 = vst [vmem:[#allocation3 + $0x20] sm:$0xff] -inf
          %225 = vst [vmem:[#allocation3 + $0x28] sm:$0xff] -inf
          %226 = vst [vmem:[#allocation3 + $0x30] sm:$0xff] -inf
          %227 = vst [vmem:[#allocation3 + $0x38] sm:$0xff] -inf
        $region40: #{tpu_custom_call.1} parent=31 // pred_fallthru
          _
        %v228 = vld [vmem:[%s179] sm:$0xff]
        %v229 = vld [vmem:[%s179 + $0x10] sm:$0xff]
        %v230 = vld [vmem:[%s179 + $0x20] sm:$0xff]
        %v231 = vld [vmem:[%s179 + $0x30] sm:$0xff]
        %v232 = vld [vmem:[%s179 + $0x40] sm:$0xff]
        %v233 = vld [vmem:[%s179 + $0x50] sm:$0xff]
        %v234 = vld [vmem:[%s179 + $0x60] sm:$0xff]
        %v235 = vld [vmem:[%s179 + $0x70] sm:$0xff]
        %v236 = vld [vmem:[#allocation2] sm:$0xff]
        %v237 = vld [vmem:[#allocation2 + $0x8] sm:$0xff]
        %v238 = vld [vmem:[#allocation2 + $0x10] sm:$0xff]
        %v239 = vld [vmem:[#allocation2 + $0x18] sm:$0xff]
        %v240 = vld [vmem:[#allocation2 + $0x20] sm:$0xff]
        %v241 = vld [vmem:[#allocation2 + $0x28] sm:$0xff]
        %v242 = vld [vmem:[#allocation2 + $0x30] sm:$0xff]
        %v243 = vld [vmem:[#allocation2 + $0x38] sm:$0xff]
        %v244 = vadd.f32 %v236, %v228
        %v245 = vadd.f32 %v237, %v229
        %v246 = vadd.f32 %v238, %v230
        %v247 = vadd.f32 %v239, %v231
        %v248 = vadd.f32 %v240, %v232
        %v249 = vadd.f32 %v241, %v233
        %v250 = vadd.f32 %v242, %v234
        %v251 = vadd.f32 %v243, %v235
        %252 = vst [vmem:[#allocation2] sm:$0xff] %v244
        %253 = vst [vmem:[#allocation2 + $0x8] sm:$0xff] %v245
        %254 = vst [vmem:[#allocation2 + $0x10] sm:$0xff] %v246
        %255 = vst [vmem:[#allocation2 + $0x18] sm:$0xff] %v247
        %256 = vst [vmem:[#allocation2 + $0x20] sm:$0xff] %v248
        %257 = vst [vmem:[#allocation2 + $0x28] sm:$0xff] %v249
        %258 = vst [vmem:[#allocation2 + $0x30] sm:$0xff] %v250
        %259 = vst [vmem:[#allocation2 + $0x38] sm:$0xff] %v251
        %v260 = vld [vmem:[#allocation3] sm:$0xff]
        %v261 = vld [vmem:[#allocation3 + $0x8] sm:$0xff]
        %v262 = vld [vmem:[#allocation3 + $0x10] sm:$0xff]
        %v263 = vld [vmem:[#allocation3 + $0x18] sm:$0xff]
        %v264 = vld [vmem:[#allocation3 + $0x20] sm:$0xff]
        %v265 = vld [vmem:[#allocation3 + $0x28] sm:$0xff]
        %v266 = vld [vmem:[#allocation3 + $0x30] sm:$0xff]
        %v267 = vld [vmem:[#allocation3 + $0x38] sm:$0xff]
        %v268 = vmax.f32 %v260, %v228
        %v269 = vmax.f32 %v261, %v229
        %v270 = vmax.f32 %v262, %v230
        %v271 = vmax.f32 %v263, %v231
        %v272 = vmax.f32 %v264, %v232
        %v273 = vmax.f32 %v265, %v233
        %v274 = vmax.f32 %v266, %v234
        %v275 = vmax.f32 %v267, %v235
        %276 = vst [vmem:[#allocation3] sm:$0xff] %v268
        %277 = vst [vmem:[#allocation3 + $0x8] sm:$0xff] %v269
        %278 = vst [vmem:[#allocation3 + $0x10] sm:$0xff] %v270
        %279 = vst [vmem:[#allocation3 + $0x18] sm:$0xff] %v271
        %280 = vst [vmem:[#allocation3 + $0x20] sm:$0xff] %v272
        %281 = vst [vmem:[#allocation3 + $0x28] sm:$0xff] %v273
        %282 = vst [vmem:[#allocation3 + $0x30] sm:$0xff] %v274
        %283 = vst [vmem:[#allocation3 + $0x38] sm:$0xff] %v275
        %v284 = vld [vmem:[%s179 + $0x8] sm:$0xff]
        %v285 = vld [vmem:[%s179 + $0x18] sm:$0xff]
        %v286 = vld [vmem:[%s179 + $0x28] sm:$0xff]
        %v287 = vld [vmem:[%s179 + $0x38] sm:$0xff]
        %v288 = vld [vmem:[%s179 + $0x48] sm:$0xff]
        %v289 = vld [vmem:[%s179 + $0x58] sm:$0xff]
        %v290 = vld [vmem:[%s179 + $0x68] sm:$0xff]
        %v291 = vld [vmem:[%s179 + $0x78] sm:$0xff]
        %v292 = vld [vmem:[#allocation2] sm:$0xff]
        %v293 = vld [vmem:[#allocation2 + $0x8] sm:$0xff]
        %v294 = vld [vmem:[#allocation2 + $0x10] sm:$0xff]
        %v295 = vld [vmem:[#allocation2 + $0x18] sm:$0xff]
        %v296 = vld [vmem:[#allocation2 + $0x20] sm:$0xff]
        %v297 = vld [vmem:[#allocation2 + $0x28] sm:$0xff]
        %v298 = vld [vmem:[#allocation2 + $0x30] sm:$0xff]
        %v299 = vld [vmem:[#allocation2 + $0x38] sm:$0xff]
        %v300 = vadd.f32 %v292, %v284
        %v301 = vadd.f32 %v293, %v285
        %v302 = vadd.f32 %v294, %v286
        %v303 = vadd.f32 %v295, %v287
        %v304 = vadd.f32 %v296, %v288
        %v305 = vadd.f32 %v297, %v289
        %v306 = vadd.f32 %v298, %v290
        %v307 = vadd.f32 %v299, %v291
        %308 = vst [vmem:[#allocation2] sm:$0xff] %v300
        %309 = vst [vmem:[#allocation2 + $0x8] sm:$0xff] %v301
        %310 = vst [vmem:[#allocation2 + $0x10] sm:$0xff] %v302
        %311 = vst [vmem:[#allocation2 + $0x18] sm:$0xff] %v303
        %312 = vst [vmem:[#allocation2 + $0x20] sm:$0xff] %v304
        %313 = vst [vmem:[#allocation2 + $0x28] sm:$0xff] %v305
        %314 = vst [vmem:[#allocation2 + $0x30] sm:$0xff] %v306
        %315 = vst [vmem:[#allocation2 + $0x38] sm:$0xff] %v307
        %v316 = vld [vmem:[#allocation3] sm:$0xff]
        %v317 = vld [vmem:[#allocation3 + $0x8] sm:$0xff]
        %v318 = vld [vmem:[#allocation3 + $0x10] sm:$0xff]
        %v319 = vld [vmem:[#allocation3 + $0x18] sm:$0xff]
        %v320 = vld [vmem:[#allocation3 + $0x20] sm:$0xff]
        %v321 = vld [vmem:[#allocation3 + $0x28] sm:$0xff]
        %v322 = vld [vmem:[#allocation3 + $0x30] sm:$0xff]
        %v323 = vld [vmem:[#allocation3 + $0x38] sm:$0xff]
        %v324 = vmax.f32 %v316, %v284
        %v325 = vmax.f32 %v317, %v285
        %v326 = vmax.f32 %v318, %v286
        %v327 = vmax.f32 %v319, %v287
        %v328 = vmax.f32 %v320, %v288
        %v329 = vmax.f32 %v321, %v289
        %v330 = vmax.f32 %v322, %v290
        %v331 = vmax.f32 %v323, %v291
        %332 = vst [vmem:[#allocation3] sm:$0xff] %v324
        %333 = vst [vmem:[#allocation3 + $0x8] sm:$0xff] %v325
        %334 = vst [vmem:[#allocation3 + $0x10] sm:$0xff] %v326
        %335 = vst [vmem:[#allocation3 + $0x18] sm:$0xff] %v327
        %336 = vst [vmem:[#allocation3 + $0x20] sm:$0xff] %v328
        %337 = vst [vmem:[#allocation3 + $0x28] sm:$0xff] %v329
        %338 = vst [vmem:[#allocation3 + $0x30] sm:$0xff] %v330
        %339 = vst [vmem:[#allocation3 + $0x38] sm:$0xff] %v331
        // Predicated region
        $region41: #{tpu_custom_call.1} parent=31 // pred_check
          %p340 = pneg %p208
        $region42: #{tpu_custom_call.1} parent=31 // pred_check_branch
          %342 = sbr.rel (%p340) target = $region44
        $region43: #{tpu_custom_call.1} parent=31 // pred_region
          %v343 = vld [vmem:[#allocation2] sm:$0xff]
          %v344 = vld [vmem:[#allocation2 + $0x8] sm:$0xff]
          %v345 = vld [vmem:[#allocation2 + $0x10] sm:$0xff]
          %v346 = vld [vmem:[#allocation2 + $0x18] sm:$0xff]
          %v347 = vld [vmem:[#allocation2 + $0x20] sm:$0xff]
          %v348 = vld [vmem:[#allocation2 + $0x28] sm:$0xff]
          %v349 = vld [vmem:[#allocation2 + $0x30] sm:$0xff]
          %v350 = vld [vmem:[#allocation2 + $0x38] sm:$0xff]
          %351 = vadd.xlane.f32.xlu0 %v343
          %v352 = vpop.xlane.xlu0 %351
          %353 = vadd.xlane.f32.xlu0 %v344
          %v354 = vpop.xlane.xlu0 %353
          %355 = vadd.xlane.f32.xlu0 %v345
          %v356 = vpop.xlane.xlu0 %355
          %357 = vadd.xlane.f32.xlu0 %v346
          %v358 = vpop.xlane.xlu0 %357
          %359 = vadd.xlane.f32.xlu0 %v347
          %v360 = vpop.xlane.xlu0 %359
          %361 = vadd.xlane.f32.xlu0 %v348
          %v362 = vpop.xlane.xlu0 %361
          %363 = vadd.xlane.f32.xlu0 %v349
          %v364 = vpop.xlane.xlu0 %363
          %365 = vadd.xlane.f32.xlu0 %v350
          %v366 = vpop.xlane.xlu0 %365
          %v367 = vmul.f32 %v352, 0.00390625
          %v368 = vmul.f32 %v354, 0.00390625
          %v369 = vmul.f32 %v356, 0.00390625
          %v370 = vmul.f32 %v358, 0.00390625
          %v371 = vmul.f32 %v360, 0.00390625
          %v372 = vmul.f32 %v362, 0.00390625
          %v373 = vmul.f32 %v364, 0.00390625
          %v374 = vmul.f32 %v366, 0.00390625
          %v375 = vld [vmem:[#allocation3] sm:$0xff]
          %v376 = vld [vmem:[#allocation3 + $0x8] sm:$0xff]
          %v377 = vld [vmem:[#allocation3 + $0x10] sm:$0xff]
          %v378 = vld [vmem:[#allocation3 + $0x18] sm:$0xff]
          %v379 = vld [vmem:[#allocation3 + $0x20] sm:$0xff]
          %v380 = vld [vmem:[#allocation3 + $0x28] sm:$0xff]
          %v381 = vld [vmem:[#allocation3 + $0x30] sm:$0xff]
          %v382 = vld [vmem:[#allocation3 + $0x38] sm:$0xff]
          %383 = vmax.xlane.f32.xlu0 %v375
          %v384 = vpop.xlane.xlu0 %383
          %385 = vmax.xlane.f32.xlu0 %v376
          %v386 = vpop.xlane.xlu0 %385
          %387 = vmax.xlane.f32.xlu0 %v377
          %v388 = vpop.xlane.xlu0 %387
          %389 = vmax.xlane.f32.xlu0 %v378
          %v390 = vpop.xlane.xlu0 %389
          %391 = vmax.xlane.f32.xlu0 %v379
          %v392 = vpop.xlane.xlu0 %391
          %393 = vmax.xlane.f32.xlu0 %v380
          %v394 = vpop.xlane.xlu0 %393
          %395 = vmax.xlane.f32.xlu0 %v381
          %v396 = vpop.xlane.xlu0 %395
          %397 = vmax.xlane.f32.xlu0 %v382
          %v398 = vpop.xlane.xlu0 %397
          %vm399 = vcmask 7168
          %v400 = vsel %vm399, %v367, %v384
          %v401 = vsel %vm399, %v368, %v386
          %v402 = vsel %vm399, %v369, %v388
          %v403 = vsel %vm399, %v370, %v390
          %v404 = vsel %vm399, %v371, %v392
          %v405 = vsel %vm399, %v372, %v394
          %v406 = vsel %vm399, %v373, %v396
          %v407 = vsel %vm399, %v374, %v398
          %v408 = vld [vmem:[%s1] sm:$0xf]
          %vm409 = vcmask 523264
          %v411 = vsel %vm409, %v408, 0
          %413 = vmatprep.subr.mxu0 0.0
          %414 = vmatpush1.msra.mxu0 %v400
          %415 = vmatprep.subr.mxu0 0.0
          %416 = vmatpush1.msra.mxu0 %v401
          %417 = vmatprep.subr.mxu0 0.0
          %418 = vmatpush1.msra.mxu0 %v402
          %419 = vmatprep.subr.mxu0 0.0
          %420 = vmatpush1.msra.mxu0 %v403
          %421 = vmatprep.subr.mxu0 0.0
          %422 = vmatpush1.msra.mxu0 %v404
          %423 = vmatprep.subr.mxu0 0.0
          %424 = vmatpush1.msra.mxu0 %v405
          %425 = vmatprep.subr.mxu0 0.0
          %426 = vmatpush1.msra.mxu0 %v406
          %427 = vmatprep.subr.mxu0 0.0
          %428 = vmatpush1.msra.mxu0 %v407
          %429 = vmatprep.subr.mxu0 0.0
          %430 = vmatpush1.msra.mxu0 0.0
          %431 = vmatprep.subr.mxu0 0.0
          %432 = vmatpush1.msra.mxu0 0.0
          %433 = vmatprep.subr.mxu0 0.0
          %434 = vmatpush1.msra.mxu0 0.0
          %435 = vmatprep.subr.mxu0 0.0
          %436 = vmatpush1.msra.mxu0 0.0
          %437 = vmatprep.subr.mxu0 0.0
          %438 = vmatpush1.msra.mxu0 0.0
          %439 = vmatprep.subr.mxu0 0.0
          %440 = vmatpush1.msra.mxu0 0.0
          %441 = vmatprep.subr.mxu0 0.0
          %442 = vmatpush1.msra.mxu0 0.0
          %443 = vmatprep.subr.mxu0 0.0
          %444 = vmatpush1.msra.mxu0 0.0
          %445 = vmatprep.subr.mxu0 0.0
          %446 = vmatpush1.msra.mxu0 0.0
          %447 = vmatprep.subr.mxu0 0.0
          %448 = vmatpush1.msra.mxu0 0.0
          %449 = vmatprep.subr.mxu0 0.0
          %450 = vmatpush1.msra.mxu0 0.0
          %451 = vmatprep.subr.mxu0 0.0
          %452 = vmatpush1.msra.mxu0 0.0
          %453 = vmatprep.subr.mxu0 0.0
          %454 = vmatpush1.msra.mxu0 0.0
          %455 = vmatprep.subr.mxu0 0.0
          %456 = vmatpush1.msra.mxu0 0.0
          %457 = vmatprep.subr.mxu0 0.0
          %458 = vmatpush1.msra.mxu0 0.0
          %459 = vmatprep.subr.mxu0 0.0
          %460 = vmatpush1.msra.mxu0 0.0
          %461 = vmatprep.subr.mxu0 0.0
          %462 = vmatpush1.msra.mxu0 0.0
          %463 = vmatprep.subr.mxu0 0.0
          %464 = vmatpush1.msra.mxu0 0.0
          %465 = vmatprep.subr.mxu0 0.0
          %466 = vmatpush1.msra.mxu0 0.0
          %467 = vmatprep.subr.mxu0 0.0
          %468 = vmatpush1.msra.mxu0 0.0
          %469 = vmatprep.subr.mxu0 0.0
          %470 = vmatpush1.msra.mxu0 0.0
          %471 = vmatprep.subr.mxu0 0.0
          %472 = vmatpush1.msra.mxu0 0.0
          %473 = vmatprep.subr.mxu0 0.0
          %474 = vmatpush1.msra.mxu0 0.0
          %475 = vmatprep.subr.mxu0 0.0
          %476 = vmatpush1.msra.mxu0 0.0
          %477 = vmatprep.mubr.f32.mxu0 0.0
          %478 = vmatmul.mubr.f32.gmra.mrb[0].mxu0 %v411
          %v479 = vpop.f32.mrb[0].mxu0
          %v480 = vadd.f32 0.0, %v479
          %v481 = vpop.f32.mrb[0].mxu0
          %482 = vdwg.mxu0
          %v483 = vmax.f32 %v480, 0.0
          %v484 = vld [vmem:[%s2] sm:$0xff]
          %v485 = vld [vmem:[%s2 + $0x8] sm:$0xff]
          %v486 = vld [vmem:[%s2 + $0x10] sm:$0xff]
          %v487 = vld [vmem:[%s2 + $0x18] sm:$0xff]
          %v488 = vld [vmem:[%s2 + $0x20] sm:$0xff]
          %v489 = vld [vmem:[%s2 + $0x28] sm:$0xff]
          %v490 = vld [vmem:[%s2 + $0x30] sm:$0xff]
          %v491 = vld [vmem:[%s2 + $0x38] sm:$0xff]
          %vm492 = vcmask 31744
          %v494 = vsel %vm492, %v484, 0
          %v497 = vsel %vm492, %v485, 0
          %v500 = vsel %vm492, %v486, 0
          %v503 = vsel %vm492, %v487, 0
          %v506 = vsel %vm492, %v488, 0
          %v509 = vsel %vm492, %v489, 0
          %v512 = vsel %vm492, %v490, 0
          %v515 = vsel %vm492, %v491, 0
          %vm517 = vcmask 1043456
          %v519 = vsel %vm517, %v483, 0
          %521 = vmatprep.subr.mxu0 0.0
          %522 = vmatpush1.msra.mxu0 %v519
          %523 = vmatprep.subr.mxu0 0.0
          %524 = vmatpush1.msra.mxu0 0.0
          %525 = vmatprep.subr.mxu0 0.0
          %526 = vmatpush1.msra.mxu0 0.0
          %527 = vmatprep.subr.mxu0 0.0
          %528 = vmatpush1.msra.mxu0 0.0
          %529 = vmatprep.subr.mxu0 0.0
          %530 = vmatpush1.msra.mxu0 0.0
          %531 = vmatprep.subr.mxu0 0.0
          %532 = vmatpush1.msra.mxu0 0.0
          %533 = vmatprep.subr.mxu0 0.0
          %534 = vmatpush1.msra.mxu0 0.0
          %535 = vmatprep.subr.mxu0 0.0
          %536 = vmatpush1.msra.mxu0 0.0
          %537 = vmatprep.subr.mxu0 0.0
          %538 = vmatpush1.msra.mxu0 0.0
          %539 = vmatprep.subr.mxu0 0.0
          %540 = vmatpush1.msra.mxu0 0.0
          %541 = vmatprep.subr.mxu0 0.0
          %542 = vmatpush1.msra.mxu0 0.0
          %543 = vmatprep.subr.mxu0 0.0
          %544 = vmatpush1.msra.mxu0 0.0
          %545 = vmatprep.subr.mxu0 0.0
          %546 = vmatpush1.msra.mxu0 0.0
          %547 = vmatprep.subr.mxu0 0.0
          %548 = vmatpush1.msra.mxu0 0.0
          %549 = vmatprep.subr.mxu0 0.0
          %550 = vmatpush1.msra.mxu0 0.0
          %551 = vmatprep.subr.mxu0 0.0
          %552 = vmatpush1.msra.mxu0 0.0
          %553 = vmatprep.subr.mxu0 0.0
          %554 = vmatpush1.msra.mxu0 0.0
          %555 = vmatprep.subr.mxu0 0.0
          %556 = vmatpush1.msra.mxu0 0.0
          %557 = vmatprep.subr.mxu0 0.0
          %558 = vmatpush1.msra.mxu0 0.0
          %559 = vmatprep.subr.mxu0 0.0
          %560 = vmatpush1.msra.mxu0 0.0
          %561 = vmatprep.subr.mxu0 0.0
          %562 = vmatpush1.msra.mxu0 0.0
          %563 = vmatprep.subr.mxu0 0.0
          %564 = vmatpush1.msra.mxu0 0.0
          %565 = vmatprep.subr.mxu0 0.0
          %566 = vmatpush1.msra.mxu0 0.0
          %567 = vmatprep.subr.mxu0 0.0
          %568 = vmatpush1.msra.mxu0 0.0
          %569 = vmatprep.subr.mxu0 0.0
          %570 = vmatpush1.msra.mxu0 0.0
          %571 = vmatprep.subr.mxu0 0.0
          %572 = vmatpush1.msra.mxu0 0.0
          %573 = vmatprep.subr.mxu0 0.0
          %574 = vmatpush1.msra.mxu0 0.0
          %575 = vmatprep.subr.mxu0 0.0
          %576 = vmatpush1.msra.mxu0 0.0
          %577 = vmatprep.subr.mxu0 0.0
          %578 = vmatpush1.msra.mxu0 0.0
          %579 = vmatprep.subr.mxu0 0.0
          %580 = vmatpush1.msra.mxu0 0.0
          %581 = vmatprep.subr.mxu0 0.0
          %582 = vmatpush1.msra.mxu0 0.0
          %583 = vmatprep.subr.mxu0 0.0
          %584 = vmatpush1.msra.mxu0 0.0
          %585 = vmatprep.mubr.f32.mxu0 0.0
          %586 = vmatmul.mubr.f32.gmra.mrb[0].mxu0 %v494
          %v587 = vpop.f32.mrb[0].mxu0
          %v588 = vadd.f32 0.0, %v587
          %v589 = vpop.f32.mrb[0].mxu0
          %590 = vmatprep.mubr.f32.mxu0 0.0
          %591 = vmatmul.mubr.f32.gmra.mrb[0].mxu0 %v497
          %v592 = vpop.f32.mrb[0].mxu0
          %v593 = vadd.f32 0.0, %v592
          %v594 = vpop.f32.mrb[0].mxu0
          %595 = vmatprep.mubr.f32.mxu0 0.0
          %596 = vmatmul.mubr.f32.gmra.mrb[0].mxu0 %v500
          %v597 = vpop.f32.mrb[0].mxu0
          %v598 = vadd.f32 0.0, %v597
          %v599 = vpop.f32.mrb[0].mxu0
          %600 = vmatprep.mubr.f32.mxu0 0.0
          %601 = vmatmul.mubr.f32.gmra.mrb[0].mxu0 %v503
          %v602 = vpop.f32.mrb[0].mxu0
          %v603 = vadd.f32 0.0, %v602
          %v604 = vpop.f32.mrb[0].mxu0
          %605 = vmatprep.mubr.f32.mxu0 0.0
          %606 = vmatmul.mubr.f32.gmra.mrb[0].mxu0 %v506
          %v607 = vpop.f32.mrb[0].mxu0
          %v608 = vadd.f32 0.0, %v607
          %v609 = vpop.f32.mrb[0].mxu0
          %610 = vmatprep.mubr.f32.mxu0 0.0
          %611 = vmatmul.mubr.f32.gmra.mrb[0].mxu0 %v509
          %v612 = vpop.f32.mrb[0].mxu0
          %v613 = vadd.f32 0.0, %v612
          %v614 = vpop.f32.mrb[0].mxu0
          %615 = vmatprep.mubr.f32.mxu0 0.0
          %616 = vmatmul.mubr.f32.gmra.mrb[0].mxu0 %v512
          %v617 = vpop.f32.mrb[0].mxu0
          %v618 = vadd.f32 0.0, %v617
          %v619 = vpop.f32.mrb[0].mxu0
          %620 = vmatprep.mubr.f32.mxu0 0.0
          %621 = vmatmul.mubr.f32.gmra.mrb[0].mxu0 %v515
          %v622 = vpop.f32.mrb[0].mxu0
          %v623 = vadd.f32 0.0, %v622
          %v624 = vpop.f32.mrb[0].mxu0
          %625 = vdwg.mxu0
          %634 = vrot.lane.b32.xlu0 %v588, 127
          %v635 = vpop.permute.xlu0 %634
          %636 = vrot.lane.b32.xlu0 %v593, 127
          %v637 = vpop.permute.xlu0 %636
          %638 = vrot.lane.b32.xlu0 %v598, 127
          %v639 = vpop.permute.xlu0 %638
          %640 = vrot.lane.b32.xlu0 %v603, 127
          %v641 = vpop.permute.xlu0 %640
          %642 = vrot.lane.b32.xlu0 %v608, 127
          %v643 = vpop.permute.xlu0 %642
          %644 = vrot.lane.b32.xlu0 %v613, 127
          %v645 = vpop.permute.xlu0 %644
          %646 = vrot.lane.b32.xlu0 %v618, 127
          %v647 = vpop.permute.xlu0 %646
          %648 = vrot.lane.b32.xlu0 %v623, 127
          %v649 = vpop.permute.xlu0 %648
          %v658 = vadd.f32 %v588, %v635
          %v659 = vadd.f32 %v593, %v637
          %v660 = vadd.f32 %v598, %v639
          %v661 = vadd.f32 %v603, %v641
          %v662 = vadd.f32 %v608, %v643
          %v663 = vadd.f32 %v613, %v645
          %v664 = vadd.f32 %v618, %v647
          %v665 = vadd.f32 %v623, %v649
          %v666 = vxor.u32 %v658, 2147483648
          %v667 = vxor.u32 %v659, 2147483648
          %v668 = vxor.u32 %v660, 2147483648
          %v669 = vxor.u32 %v661, 2147483648
          %v670 = vxor.u32 %v662, 2147483648
          %v671 = vxor.u32 %v663, 2147483648
          %v672 = vxor.u32 %v664, 2147483648
          %v673 = vxor.u32 %v665, 2147483648
          %v674 = vmul.f32 %v666, 1.442695
          %v675 = vpow.pop %v674
          %v676 = vmul.f32 %v667, 1.442695
          %v677 = vpow.pop %v676
          %v678 = vmul.f32 %v668, 1.442695
          %v679 = vpow.pop %v678
          %v680 = vmul.f32 %v669, 1.442695
          %v681 = vpow.pop %v680
          %v682 = vmul.f32 %v670, 1.442695
          %v683 = vpow.pop %v682
          %v684 = vmul.f32 %v671, 1.442695
          %v685 = vpow.pop %v684
          %v686 = vmul.f32 %v672, 1.442695
          %v687 = vpow.pop %v686
          %v688 = vmul.f32 %v673, 1.442695
          %v689 = vpow.pop %v688
          %v690 = vadd.f32 %v675, 1.0
          %v691 = vadd.f32 %v677, 1.0
          %v692 = vadd.f32 %v679, 1.0
          %v693 = vadd.f32 %v681, 1.0
          %v694 = vadd.f32 %v683, 1.0
          %v695 = vadd.f32 %v685, 1.0
          %v696 = vadd.f32 %v687, 1.0
          %v697 = vadd.f32 %v689, 1.0
          %v698 = vrcp.pop %v690
          %v699 = vmul.f32 1.0, %v698
          %v700 = vrcp.pop %v691
          %v701 = vmul.f32 1.0, %v700
          %v702 = vrcp.pop %v692
          %v703 = vmul.f32 1.0, %v702
          %v704 = vrcp.pop %v693
          %v705 = vmul.f32 1.0, %v704
          %v706 = vrcp.pop %v694
          %v707 = vmul.f32 1.0, %v706
          %v708 = vrcp.pop %v695
          %v709 = vmul.f32 1.0, %v708
          %v710 = vrcp.pop %v696
          %v711 = vmul.f32 1.0, %v710
          %v712 = vrcp.pop %v697
          %v713 = vmul.f32 1.0, %v712
          %714 = vst.msk [vmem:[%s207] sm:$0xff] %vm399, %v699
          %715 = vst.msk [vmem:[%s207 + $0x8] sm:$0xff] %vm399, %v701
          %716 = vst.msk [vmem:[%s207 + $0x10] sm:$0xff] %vm399, %v703
          %717 = vst.msk [vmem:[%s207 + $0x18] sm:$0xff] %vm399, %v705
          %718 = vst.msk [vmem:[%s207 + $0x20] sm:$0xff] %vm399, %v707
          %719 = vst.msk [vmem:[%s207 + $0x28] sm:$0xff] %vm399, %v709
          %720 = vst.msk [vmem:[%s207 + $0x30] sm:$0xff] %vm399, %v711
          %721 = vst.msk [vmem:[%s207 + $0x38] sm:$0xff] %vm399, %v713
        $region44: #{tpu_custom_call.1} parent=31 // pred_fallthru
          _
        %p722 = scmp.lt.s32.totalorder %s21, 1
        %s723 = scalar_select %p722, %s21, 1
        %s724 = smul.addr %s723, 8
        %s725 = smul.addr %s724, 8
        %s726 = scalar_lea.vmem %s3, %s725
        // Predicated region
        $region45: #{tpu_custom_call.1} parent=31 // pred_check
          %p727 = pneg %p117
        $region46: #{tpu_custom_call.1} parent=31 // pred_check_branch
          %729 = sbr.rel (%p727) target = $region48
        $region47: #{tpu_custom_call.1} parent=31 // pred_region
          _
        $region48: #{tpu_custom_call.1} parent=31 // pred_fallthru
          _
      $region32: #{tpu_custom_call.1} parent=5 // pred_fallthru
        _
      %p730 = scmp.le.s32.totalorder 2, %s12
      // Predicated region
      $region49: #{tpu_custom_call.1} parent=5 // pred_check
        %p731 = pneg %p730
      $region50: #{tpu_custom_call.1} parent=5 // pred_check_branch
        %733 = sbr.rel (%p731) target = $region52
      $region51: #{tpu_custom_call.1} parent=5 // pred_region
        %s734 = ssub.s32 %s12, 2
        // Predicated region
        $region53: #{tpu_custom_call.1} parent=51 // pred_check
          %p735 = pneg %p123
        $region54: #{tpu_custom_call.1} parent=51 // pred_check_branch
          %737 = sbr.rel (%p735) target = $region56
        $region55: #{tpu_custom_call.1} parent=51 // pred_region
          %p738 = scmp.lt.s32.totalorder %s23, 1
          %s739 = scalar_select %p738, %s23, 1
          %s740 = smul.addr %s739, 8
          %s741 = smul.addr %s740, 8
          %s742 = scalar_lea.vmem %s3, %s741
        $region56: #{tpu_custom_call.1} parent=51 // pred_fallthru
          _
      $region52: #{tpu_custom_call.1} parent=5 // pred_fallthru
        _
    $region6: #{tpu_custom_call.1} parent=1 // loop_footer
      %s16 = sadd.s32 1, %s12
    $region7: #{tpu_custom_call.1} parent=1 // loop_footer_branch
      %11 = sbr.rel target = $region3
    $region8: #{tpu_custom_call.1} parent=1 // loop_exit
      _
    %743 = vsyncpa [#allocation5], 1
    %s744 = scalar_lea.sflag [#allocation5], 1
    %745 = vsyncpa %s744, 1

</llo_original>
